<compile_context>
chip_gen: v6e
topology: v6e:2x2x1
jax: 0.10.0
libtpu: 0.0.40
codegen_flags: <defaults>
</compile_context>

<pallas_src>
import functools
import math

import jax
import jax.numpy as jnp
from jax.experimental import pallas as pl
from jax.experimental.pallas import tpu as pltpu

_LANE = 128
_SUBLANE = 8
_VMEM = pl.BlockSpec(memory_space=pltpu.MemorySpace.VMEM)
_COMPILER_PARAMS = pltpu.CompilerParams(
    dimension_semantics=("parallel",),
    vmem_limit_bytes=64 * 1024 * 1024,   # <= physical VMEM on v5e/v6e/v7x
)


def _ceil_to(x, m):
    return (x + m - 1) // m * m


def _row_tile(m):
    # Largest row tile that keeps full-K/full-N bf16 weight blocks resident in VMEM at
    # bert-base scale (w1+w2 ~ 9.4 MiB bf16, double-buffered activations a few MiB,
    # comfortably inside the 64 MiB v7x budget).  Tiny demo shapes collapse to one block.
    return 256 if m >= 256 else _ceil_to(m, _SUBLANE)


def _pad_rows(a, m_pad):
    if a.shape[0] == m_pad:
        return a
    return jnp.pad(a, ((0, m_pad - a.shape[0]), (0, 0)))


def _row_call(kernel, out_cols, row_args, bcast_args):
    """Run kernel(row_refs..., bcast_refs..., out_ref) on a 1-D grid over row tiles.

    row_args: (M, K_i) activations tiled over rows (double-buffered by BlockSpec).
    bcast_args: weights / biases / LN params given whole-array blocks reused per step.
    """
    m = row_args[0].shape[0]
    tm = _row_tile(m)
    m_pad = _ceil_to(m, tm)
    padded = [_pad_rows(a, m_pad) for a in row_args]
    row_specs = [pl.BlockSpec((tm, a.shape[1]), lambda i: (i, 0)) for a in row_args]
    full_specs = [pl.BlockSpec(a.shape, lambda i, nd=a.ndim: (0,) * nd)
                  for a in bcast_args]
    out = pl.pallas_call(
        kernel,
        out_shape=jax.ShapeDtypeStruct((m_pad, out_cols), jnp.float32),
        grid=(m_pad // tm,),
        in_specs=row_specs + full_specs,
        out_specs=pl.BlockSpec((tm, out_cols), lambda i: (i, 0)),
        compiler_params=_COMPILER_PARAMS,
    )(*padded, *bcast_args)
    return out[:m] if m_pad != m else out


# ----------------------------- in-kernel helpers ------------------------------

def _gelu(x):
    # TODO(synk): HF BERT uses exact erf-GELU; tanh approximation used here.
    return 0.5 * x * (1.0 + jnp.tanh(0.7978845608028654 * (x + 0.044715 * x * x * x)))


def _layernorm(h, g, b, eps):
    mu = jnp.mean(h, axis=-1, keepdims=True)
    var = jnp.mean(jnp.square(h - mu), axis=-1, keepdims=True)
    return (h - mu) * jax.lax.rsqrt(var + eps) * g + b


# ----------------------------- Pallas kernels ---------------------------------

def _qkv_dense_kernel(x_ref, w_ref, b_ref, o_ref):
    # Fused Q|K|V projection: one (tm, H) @ (H, 3H) MXU pass, bf16 operands, f32 acc.
    y = jnp.dot(x_ref[...].astype(jnp.bfloat16), w_ref[...],
                preferred_element_type=jnp.float32)
    o_ref[...] = y + b_ref[...]


def _dense_add_ln_kernel(x_ref, res_ref, w_ref, b_ref, g_ref, be_ref, o_ref, *, eps):
    # Attention output projection + residual add + LayerNorm, all in one pass (LN in f32).
    y = jnp.dot(x_ref[...].astype(jnp.bfloat16), w_ref[...],
                preferred_element_type=jnp.float32) + b_ref[...]
    o_ref[...] = _layernorm(y + res_ref[...], g_ref[...], be_ref[...], eps)


def _ffn_kernel(x_ref, w1_ref, b1_ref, w2_ref, b2_ref, g_ref, be_ref, o_ref, *, eps):
    # Whole FFN fused: dense -> GELU -> dense -> residual -> LayerNorm.
    # The (tm, intermediate) activation stays on-chip (never written to HBM).
    x = x_ref[...]
    t = jnp.dot(x.astype(jnp.bfloat16), w1_ref[...],
                preferred_element_type=jnp.float32) + b1_ref[...]
    t = _gelu(t)
    y = jnp.dot(t.astype(jnp.bfloat16), w2_ref[...],
                preferred_element_type=jnp.float32) + b2_ref[...]
    o_ref[...] = _layernorm(y + x, g_ref[...], be_ref[...], eps)


def _add_ln_kernel(x_ref, res_ref, g_ref, b_ref, o_ref, *, eps):
    o_ref[...] = _layernorm(x_ref[...] + res_ref[...], g_ref[...], b_ref[...], eps)


def _attention_kernel(q_ref, k_ref, v_ref, bias_ref, o_ref, *, num_heads, head_dim, scale):
    # One grid step = one batch element; all heads handled on a lane-dense (S, H) layout,
    # so both input and output blocks are full-width (no (S, Dh) vreg waste and no
    # XLA-side head transposes).  Per-head dots are realised by lane-masking the K/V
    # columns of the other heads to zero (full-width, guaranteed-lowerable ops).
    # TODO(synk): at real bert-base sizes (Dh=64, S>=128) replace with a flash-style
    # kernel over (128, Dh) q/k/v tiles with online softmax.
    q = q_ref[0]                # (S, H) f32
    k = k_ref[0]
    v = v_ref[0]
    bias = bias_ref[0]          # (1, S) additive mask, f32
    S, H = q.shape
    head_of_lane = jax.lax.broadcasted_iota(jnp.int32, (S, H), 1) // head_dim
    q_bf = q.astype(jnp.bfloat16)
    ctx = jnp.zeros((S, H), jnp.float32)
    for h in range(num_heads):
        msk = head_of_lane == h
        kh = jnp.where(msk, k, 0.0).astype(jnp.bfloat16)
        vh = jnp.where(msk, v, 0.0).astype(jnp.bfloat16)
        s = jnp.dot(q_bf, kh.T, preferred_element_type=jnp.float32) * scale + bias
        s = s - jnp.max(s, axis=-1, keepdims=True)
        p = jnp.exp(s)
        p = p * pl.reciprocal(jnp.sum(p, axis=-1, keepdims=True), approx=True)
        ctx = ctx + jnp.dot(p.astype(jnp.bfloat16), vh,
                            preferred_element_type=jnp.float32)
    o_ref[0] = ctx


def _head_kernel(cls_ref, pw_ref, pb_ref, cw_ref, cb_ref, o_ref):
    # Pooler (tanh) + Dropout (identity) + Linear + ReLU fused; classifier width padded
    # to 128 lanes so the output store is unmasked.
    pooled = jnp.tanh(jnp.dot(cls_ref[...].astype(jnp.bfloat16), pw_ref[...],
                              preferred_element_type=jnp.float32) + pb_ref[...])
    # TODO(synk): nn.Dropout(0.5) is identity here (inference/eval mode).
    logits = jnp.dot(pooled.astype(jnp.bfloat16), cw_ref[...],
                     preferred_element_type=jnp.float32) + cb_ref[...]
    o_ref[...] = jnp.maximum(logits, 0.0)


# ------------------------------ kernel wrappers --------------------------------

def qkv_dense(x, w_qkv, b_qkv):
    return _row_call(_qkv_dense_kernel, w_qkv.shape[1], [x],
                     [w_qkv, b_qkv.reshape(1, -1)])


def dense_add_ln(x, w, b, res, gamma, beta, eps=1e-12):
    kern = functools.partial(_dense_add_ln_kernel, eps=eps)
    return _row_call(kern, w.shape[1], [x, res],
                     [w, b.reshape(1, -1), gamma.reshape(1, -1), beta.reshape(1, -1)])


def ffn_add_ln(x, w1, b1, w2, b2, gamma, beta, eps=1e-12):
    kern = functools.partial(_ffn_kernel, eps=eps)
    return _row_call(kern, w2.shape[1], [x],
                     [w1, b1.reshape(1, -1), w2, b2.reshape(1, -1),
                      gamma.reshape(1, -1), beta.reshape(1, -1)])


def add_ln(x, res, gamma, beta, eps=1e-12):
    kern = functools.partial(_add_ln_kernel, eps=eps)
    return _row_call(kern, x.shape[1], [x, res],
                     [gamma.reshape(1, -1), beta.reshape(1, -1)])


def attention(q, k, v, attn_bias, *, num_heads, scale):
    """q,k,v: (B, S, H) f32; attn_bias: (B, 1, S) additive f32."""
    B, S, H = q.shape
    head_dim = H // num_heads
    kern = functools.partial(_attention_kernel, num_heads=num_heads,
                             head_dim=head_dim, scale=scale)
    blk = pl.BlockSpec((1, S, H), lambda b: (b, 0, 0))
    return pl.pallas_call(
        kern,
        out_shape=jax.ShapeDtypeStruct((B, S, H), jnp.float32),
        grid=(B,),
        in_specs=[blk, blk, blk, pl.BlockSpec((1, 1, S), lambda b: (b, 0, 0))],
        out_specs=blk,
        compiler_params=_COMPILER_PARAMS,
    )(q, k, v, attn_bias)


def pooler_classifier(cls_tok, pool_w, pool_b, cls_w, cls_b):
    B, H = cls_tok.shape
    n_pad = cls_w.shape[1]
    return pl.pallas_call(
        _head_kernel,
        out_shape=jax.ShapeDtypeStruct((B, n_pad), jnp.float32),
        in_specs=[_VMEM] * 5,
        out_specs=_VMEM,
    )(cls_tok, pool_w, pool_b.reshape(1, H), cls_w, cls_b.reshape(1, n_pad))


# --------------------------- parameter construction ----------------------------

def init_params(key, *, vocab=64, hidden=32, heads=4, num_layers=2,
                intermediate=64, max_pos=16, num_classes=10):
    def nrm(k, shape):
        return 0.02 * jax.random.normal(k, shape, dtype=jnp.float32)

    keys = iter(jax.random.split(key, 16 + 8 * num_layers))
    cls_cols = _ceil_to(num_classes, _LANE)          # lane-dense classifier head
    cls_w = nrm(next(keys), (hidden, num_classes))
    cls_w_pad = jnp.zeros((hidden, cls_cols), jnp.float32).at[:, :num_classes].set(cls_w)
    p = {
        "config": dict(hidden=hidden, heads=heads, num_classes=num_classes),
        "word_emb": nrm(next(keys), (vocab, hidden)),
        "pos_emb": nrm(next(keys), (max_pos, hidden)),
        "type_emb": nrm(next(keys), (2, hidden)),
        "emb_ln_g": jnp.ones((hidden,), jnp.float32),
        "emb_ln_b": jnp.zeros((hidden,), jnp.float32),
        "pool_w": nrm(next(keys), (hidden, hidden)).astype(jnp.bfloat16),
        "pool_b": jnp.zeros((hidden,), jnp.float32),
        "cls_w": cls_w_pad.astype(jnp.bfloat16),     # nn.Linear(768, 10) analog, padded
        "cls_b": jnp.zeros((cls_cols,), jnp.float32),
        "layers": [],
    }
    for _ in range(num_layers):
        wq = nrm(next(keys), (hidden, hidden))
        wk = nrm(next(keys), (hidden, hidden))
        wv = nrm(next(keys), (hidden, hidden))
        layer = {
            # Fused Q|K|V projection weight (H, 3H), bf16 operands for the MXU.
            "w_qkv": jnp.concatenate([wq, wk, wv], axis=1).astype(jnp.bfloat16),
            "b_qkv": jnp.zeros((3 * hidden,), jnp.float32),
            "wo": nrm(next(keys), (hidden, hidden)).astype(jnp.bfloat16),
            "bo": jnp.zeros((hidden,), jnp.float32),
            "ln1_g": jnp.ones((hidden,), jnp.float32),
            "ln1_b": jnp.zeros((hidden,), jnp.float32),
            "w1": nrm(next(keys), (hidden, intermediate)).astype(jnp.bfloat16),
            "b1": jnp.zeros((intermediate,), jnp.float32),
            "w2": nrm(next(keys), (intermediate, hidden)).astype(jnp.bfloat16),
            "b2": jnp.zeros((hidden,), jnp.float32),
            "ln2_g": jnp.ones((hidden,), jnp.float32),
            "ln2_b": jnp.zeros((hidden,), jnp.float32),
        }
        p["layers"].append(layer)
    return p


# -------------------------------- forward pass ----------------------------------

def bert_classifier_forward(params, input_ids, attention_mask):
    """input_ids:(B,S) int32, attention_mask:(B,S) {0,1}; returns (B, 10) relu logits."""
    cfg = params["config"]
    B, S = input_ids.shape
    H, nH = cfg["hidden"], cfg["heads"]
    Dh = H // nH
    scale = 1.0 / math.sqrt(Dh)

    # Embedding gather + positional/type adds are cheap XLA glue; the LN runs in Pallas.
    word = jnp.take(params["word_emb"], input_ids, axis=0)            # (B,S,H)
    pos = params["pos_emb"][:S][None, :, :]                           # (1,S,H)
    ttype = jnp.broadcast_to(params["type_emb"][0][None, None, :], (B, S, H))
    x = add_ln((word + pos).reshape(B * S, H), ttype.reshape(B * S, H),
               params["emb_ln_g"], params["emb_ln_b"])

    # Additive mask applied in f32 inside the attention kernel.
    attn_bias = (1.0 - attention_mask.astype(jnp.float32))[:, None, :] * -10000.0  # (B,1,S)

    for layer in params["layers"]:
        # One fused matmul for Q|K|V; split in glue (cheap slices, no transposes).
        qkv = qkv_dense(x, layer["w_qkv"], layer["b_qkv"])            # (B*S, 3H)
        q = qkv[:, :H].reshape(B, S, H)
        k = qkv[:, H:2 * H].reshape(B, S, H)
        v = qkv[:, 2 * H:].reshape(B, S, H)
        ctx = attention(q, k, v, attn_bias, num_heads=nH, scale=scale).reshape(B * S, H)
        # Output projection + residual + LN fused.
        x = dense_add_ln(ctx, layer["wo"], layer["bo"], x, layer["ln1_g"], layer["ln1_b"])
        # Whole FFN + residual + LN fused (intermediate activation stays in VMEM).
        x = ffn_add_ln(x, layer["w1"], layer["b1"], layer["w2"], layer["b2"],
                       layer["ln2_g"], layer["ln2_b"])

    cls_tok = x.reshape(B, S, H)[:, 0, :]                             # [CLS] token
    logits = pooler_classifier(cls_tok, params["pool_w"], params["pool_b"],
                               params["cls_w"], params["cls_b"])
    return logits[:, :cfg["num_classes"]]


# ------------------------------------ main ---------------------------------------

if __name__ == "__main__":
    key = jax.random.PRNGKey(0)
    k_param, k_ids = jax.random.split(key)

    B, S, VOCAB = 2, 8, 64
    params = init_params(k_param, vocab=VOCAB, hidden=32, heads=4,
                         num_layers=2, intermediate=64, max_pos=16, num_classes=10)

    input_ids = jax.random.randint(k_ids, (B, S), 0, VOCAB, dtype=jnp.int32)
    mask = jnp.ones((B, S), dtype=jnp.int32)

    out = bert_classifier_forward(params, input_ids, mask)
    out = jax.block_until_ready(out)
    assert out.shape == (B, 10) and out.dtype == jnp.float32
    print("KERNEL_OK")
</pallas_src>

<mosaic_0001>
module attributes {stable_mosaic.version = 11 : i64} {
  func.func @_add_ln_kernel(%arg0: i32, %arg1: memref<16x32xf32, #tpu.memory_space<vmem>>, %arg2: memref<16x32xf32, #tpu.memory_space<vmem>>, %arg3: memref<1x32xf32, #tpu.memory_space<vmem>>, %arg4: memref<1x32xf32, #tpu.memory_space<vmem>>, %arg5: memref<16x32xf32, #tpu.memory_space<vmem>>) attributes {dimension_semantics = [#tpu.dimension_semantics<parallel>], iteration_bounds = array<i64: 1>, scalar_prefetch = 0 : i64, scratch_operands = 0 : i64, tpu.core_type = #tpu.core_type<tc>, window_params = [{transform_indices = @transform_0, window_bounds = array<i64: 16, 32>}, {transform_indices = @transform_1, window_bounds = array<i64: 16, 32>}, {pipeline_mode = #tpu.pipeline_mode<synchronous>, transform_indices = @transform_2, window_bounds = array<i64: 1, 32>}, {pipeline_mode = #tpu.pipeline_mode<synchronous>, transform_indices = @transform_3, window_bounds = array<i64: 1, 32>}, {transform_indices = @transform_4, window_bounds = array<i64: 16, 32>}]} {
    %c0 = arith.constant 0 : index
    %c0_0 = arith.constant 0 : index
    %0 = vector.load %arg1[%c0, %c0_0] : memref<16x32xf32, #tpu.memory_space<vmem>>, vector<16x32xf32>
    %c0_1 = arith.constant 0 : index
    %c0_2 = arith.constant 0 : index
    %1 = vector.load %arg2[%c0_1, %c0_2] : memref<16x32xf32, #tpu.memory_space<vmem>>, vector<16x32xf32>
    %2 = arith.addf %0, %1 : vector<16x32xf32>
    %c0_3 = arith.constant 0 : index
    %c0_4 = arith.constant 0 : index
    %3 = vector.load %arg3[%c0_3, %c0_4] : memref<1x32xf32, #tpu.memory_space<vmem>>, vector<1x32xf32>
    %c0_5 = arith.constant 0 : index
    %c0_6 = arith.constant 0 : index
    %4 = vector.load %arg4[%c0_5, %c0_6] : memref<1x32xf32, #tpu.memory_space<vmem>>, vector<1x32xf32>
    %cst = arith.constant dense<0.000000e+00> : vector<16xf32>
    %5 = vector.multi_reduction <add>, %2, %cst [1] : vector<16x32xf32> to vector<16xf32>
    %6 = vector.shape_cast %5 : vector<16xf32> to vector<16x1xf32>
    %cst_7 = arith.constant 3.200000e+01 : f32
    %7 = vector.broadcast %cst_7 : f32 to vector<16x1xf32>
    %8 = arith.divf %6, %7 : vector<16x1xf32>
    %9 = vector.broadcast %8 : vector<16x1xf32> to vector<16x32xf32>
    %10 = arith.subf %2, %9 : vector<16x32xf32>
    %11 = arith.mulf %10, %10 : vector<16x32xf32>
    %cst_8 = arith.constant dense<0.000000e+00> : vector<16xf32>
    %12 = vector.multi_reduction <add>, %11, %cst_8 [1] : vector<16x32xf32> to vector<16xf32>
    %13 = vector.shape_cast %12 : vector<16xf32> to vector<16x1xf32>
    %cst_9 = arith.constant 3.200000e+01 : f32
    %14 = vector.broadcast %cst_9 : f32 to vector<16x1xf32>
    %15 = arith.divf %13, %14 : vector<16x1xf32>
    %16 = vector.broadcast %8 : vector<16x1xf32> to vector<16x32xf32>
    %17 = arith.subf %2, %16 : vector<16x32xf32>
    %cst_10 = arith.constant 9.99999996E-13 : f32
    %18 = vector.broadcast %cst_10 : f32 to vector<16x1xf32>
    %19 = arith.addf %15, %18 : vector<16x1xf32>
    %20 = math.rsqrt %19 : vector<16x1xf32>
    %21 = vector.broadcast %20 : vector<16x1xf32> to vector<16x32xf32>
    %22 = arith.mulf %17, %21 : vector<16x32xf32>
    %23 = vector.broadcast %3 : vector<1x32xf32> to vector<16x32xf32>
    %24 = arith.mulf %22, %23 : vector<16x32xf32>
    %25 = vector.broadcast %4 : vector<1x32xf32> to vector<16x32xf32>
    %26 = arith.addf %24, %25 : vector<16x32xf32>
    %c0_11 = arith.constant 0 : index
    %c0_12 = arith.constant 0 : index
    %27 = vector.load %arg5[%c0_11, %c0_12] : memref<16x32xf32, #tpu.memory_space<vmem>>, vector<16x32xf32>
    tpu.vector_store %arg5[%c0_11, %c0_12], %26 {strides = array<i32>} : memref<16x32xf32, #tpu.memory_space<vmem>>, vector<16x32xf32>,
    return
  }
  func.func @transform_0(%arg0: i32) -> (i32, i32) {
    %c0_i32 = arith.constant 0 : i32
    %c0_i32_0 = arith.constant 0 : i32
    return %arg0, %c0_i32 : i32, i32
  }
  func.func @transform_1(%arg0: i32) -> (i32, i32) {
    %c0_i32 = arith.constant 0 : i32
    %c0_i32_0 = arith.constant 0 : i32
    return %arg0, %c0_i32 : i32, i32
  }
  func.func @transform_2(%arg0: i32) -> (i32, i32) {
    %c0_i32 = arith.constant 0 : i32
    %c0_i32_0 = arith.constant 0 : i32
    %c0_i32_1 = arith.constant 0 : i32
    return %c0_i32, %c0_i32_0 : i32, i32
  }
  func.func @transform_3(%arg0: i32) -> (i32, i32) {
    %c0_i32 = arith.constant 0 : i32
    %c0_i32_0 = arith.constant 0 : i32
    %c0_i32_1 = arith.constant 0 : i32
    return %c0_i32, %c0_i32_0 : i32, i32
  }
  func.func @transform_4(%arg0: i32) -> (i32, i32) {
    %c0_i32 = arith.constant 0 : i32
    %c0_i32_0 = arith.constant 0 : i32
    return %arg0, %c0_i32 : i32, i32
  }
}

</mosaic_0001>

<llo_original>
// kernel: tpu_custom_call.1
$region0: #{tpu_custom_call.1}
  #allocation0 [shape = 'u32[]', space=smem, size = 0x4, offset = 0x4, fixed_abs, tag = 'smem constant byte address 0x4 - core index']
  #allocation1 [shape = 'u32[144,128]{1,0:T(1,128)}', space=vmem, size = 0x12000, scoped, tag = 'internal scratch']
  %s0 = inlined_call_operand.hbm [shape: f32[16,32], index: 0, kind: input, shape index: {}]
  %s1 = inlined_call_operand.hbm [shape: f32[16,32], index: 1, kind: input, shape index: {}]
  %s2 = inlined_call_operand.vmem [shape: f32[1,32], index: 2, kind: input, shape index: {}]
  %s3 = inlined_call_operand.vmem [shape: f32[1,32], index: 3, kind: input, shape index: {}]
  %s4 = inlined_call_operand.hbm [shape: f32[16,32], index: 4, kind: output, shape index: {}]
  %s5 = sld [smem:[#allocation0]]
  $region34: #{tpu_custom_call.1} parent=0
    _
  %s7 = ssub.s32 1, %s5
  %s8 = scalar_select 0, %s7, %s5
  $region1: #{tpu_custom_call.1} parent=0
    #allocation2 [shape = 'u8[8192]{0}', space=vmem, size = 0x2000, scoped, tag = 'input window, operand 0, single buffered']
    #allocation3 [shape = 's32[1]{0}', space=sflag, size = 0x4, scoped, tag = 'scoped memory for tpu_custom_call.1']
    #allocation4 [shape = 's32[1]{0}', space=sflag, size = 0x4, scoped, tag = 'scoped memory for tpu_custom_call.1']
    #allocation5 [shape = 'u8[8192]{0}', space=vmem, size = 0x2000, scoped, tag = 'input window, operand 1, single buffered']
    #allocation6 [shape = 's32[1]{0}', space=sflag, size = 0x4, scoped, tag = 'scoped memory for tpu_custom_call.1']
    #allocation7 [shape = 'u8[8192]{0}', space=vmem, size = 0x2000, scoped, tag = 'output window, operand 0, single buffered']
    %9 = vsyncpa [#allocation3], 0
    %10 = vsyncpa [#allocation6], 0
    %11 = vsyncpa [#allocation4], 0
    // Predicated region
    $region2: #{tpu_custom_call.1} parent=1 // pred_check
      _
    $region3: #{tpu_custom_call.1} parent=1 // pred_check_branch
      %13 = sbr.rel (0) target = $region5
    $region4: #{tpu_custom_call.1} parent=1 // pred_region
      %s15 = ssub.s32 256, 256
      %16 = vsyncadd [#allocation3], %s15
      %s17 = sshll.u32 [#allocation2], 4
      %s18 = int_to_ptr.vmem [resolvable:$true] %s17
      %23 = dma.hbm_to_vmem [thread:$0]  %s0, 256, %s18, [#allocation3], 128, 128, 8
    $region5: #{tpu_custom_call.1} parent=1 // pred_fallthru
      _
    // Predicated region
    $region6: #{tpu_custom_call.1} parent=1 // pred_check
      _
    $region7: #{tpu_custom_call.1} parent=1 // pred_check_branch
      %25 = sbr.rel (0) target = $region9
    $region8: #{tpu_custom_call.1} parent=1 // pred_region
      %s27 = ssub.s32 256, 256
      %28 = vsyncadd [#allocation6], %s27
      %s29 = sshll.u32 [#allocation5], 4
      %s30 = int_to_ptr.vmem [resolvable:$true] %s29
      %35 = dma.hbm_to_vmem [thread:$0]  %s1, 256, %s30, [#allocation6], 128, 128, 8
    $region9: #{tpu_custom_call.1} parent=1 // pred_fallthru
      _
    // Predicated region
    $region10: #{tpu_custom_call.1} parent=1 // pred_check
      _
    $region11: #{tpu_custom_call.1} parent=1 // pred_check_branch
      %37 = sbr.rel (0) target = $region13
    $region12: #{tpu_custom_call.1} parent=1 // pred_region
      _
    $region13: #{tpu_custom_call.1} parent=1 // pred_fallthru
      _
    // Predicated region
    $region14: #{tpu_custom_call.1} parent=1 // pred_check
      _
    $region15: #{tpu_custom_call.1} parent=1 // pred_check_branch
      %39 = sbr.rel (0) target = $region17
    $region16: #{tpu_custom_call.1} parent=1 // pred_region
      _
    $region17: #{tpu_custom_call.1} parent=1 // pred_fallthru
      _
    // Predicated region
    $region18: #{tpu_custom_call.1} parent=1 // pred_check
      _
    $region19: #{tpu_custom_call.1} parent=1 // pred_check_branch
      %41 = sbr.rel (0) target = $region21
    $region20: #{tpu_custom_call.1} parent=1 // pred_region
      %42 = dma.done [#allocation3], 256
    $region21: #{tpu_custom_call.1} parent=1 // pred_fallthru
      _
    // Predicated region
    $region22: #{tpu_custom_call.1} parent=1 // pred_check
      _
    $region23: #{tpu_custom_call.1} parent=1 // pred_check_branch
      %44 = sbr.rel (0) target = $region25
    $region24: #{tpu_custom_call.1} parent=1 // pred_region
      %45 = dma.done [#allocation6], 256
    $region25: #{tpu_custom_call.1} parent=1 // pred_fallthru
      _
    %v46 = vld [vmem:[#allocation2] sm:$0xff]
    %v47 = vld [vmem:[#allocation2 + $0x8] sm:$0xff]
    %v48 = vld [vmem:[#allocation5] sm:$0xff]
    %v49 = vld [vmem:[#allocation5 + $0x8] sm:$0xff]
    %v50 = vadd.f32 %v46, %v48
    %v51 = vadd.f32 %v47, %v49
    %v52 = vld [vmem:[%s2] sm:$0x1]
    %v53 = vld [vmem:[%s3] sm:$0x1]
    %vm54 = vcmask 261120
    %v55 = vsel %vm54, %v50, 0.0
    %56 = vadd.xlane.f32.xlu0 %v55
    %v57 = vpop.xlane.xlu0 %56
    %v58 = vsel %vm54, %v51, 0.0
    %59 = vadd.xlane.f32.xlu0 %v58
    %v60 = vpop.xlane.xlu0 %59
    %v61 = vrcp.pop 32.0
    %v62 = vmul.f32 %v57, %v61
    %v63 = vmul.f32 %v60, %v61
    %v64 = vsub.f32 %v50, %v62
    %v65 = vsub.f32 %v51, %v63
    %v66 = vmul.f32 %v64, %v64
    %v67 = vmul.f32 %v65, %v65
    %v68 = vsel %vm54, %v66, 0.0
    %69 = vadd.xlane.f32.xlu0 %v68
    %v70 = vpop.xlane.xlu0 %69
    %v71 = vsel %vm54, %v67, 0.0
    %72 = vadd.xlane.f32.xlu0 %v71
    %v73 = vpop.xlane.xlu0 %72
    %v74 = vmul.f32 %v70, %v61
    %v75 = vmul.f32 %v73, %v61
    %v76 = vadd.f32 %v74, 1e-12
    %v77 = vadd.f32 %v75, 1e-12
    %v78 = vrsqrt.pop %v76
    %v79 = vrsqrt.pop %v77
    %v80 = vmul.f32 %v64, %v78
    %v81 = vmul.f32 %v65, %v79
    %v83 = vlaneseq
    %v84 = vshrl.u32 %v83, 7
    %v85 = vsub.s32 0, %v84
    %v86 = vrot.slane %v52, %v85
    %v88 = vmul.f32 %v80, %v86
    %v89 = vmul.f32 %v81, %v86
    %v91 = vlaneseq
    %v92 = vshrl.u32 %v91, 7
    %v93 = vsub.s32 0, %v92
    %v94 = vrot.slane %v53, %v93
    %v96 = vadd.f32 %v88, %v94
    %v97 = vadd.f32 %v89, %v94
    %98 = vst.msk [vmem:[#allocation7] sm:$0xff] %vm54, %v96
    %99 = vst.msk [vmem:[#allocation7 + $0x8] sm:$0xff] %vm54, %v97
    // Predicated region
    $region26: #{tpu_custom_call.1} parent=1 // pred_check
      _
    $region27: #{tpu_custom_call.1} parent=1 // pred_check_branch
      %101 = sbr.rel (0) target = $region29
    $region28: #{tpu_custom_call.1} parent=1 // pred_region
      %s103 = ssub.s32 256, 256
      %104 = vsyncadd [#allocation4], %s103
      %s105 = sshll.u32 [#allocation7], 4
      %s106 = int_to_ptr.vmem [resolvable:$true] %s105
      %111 = dma.vmem_to_hbm [thread:$0]  %s106, 256, %s4, [#allocation4], 128, 128, 8
    $region29: #{tpu_custom_call.1} parent=1 // pred_fallthru
      _
    // Predicated region
    $region30: #{tpu_custom_call.1} parent=1 // pred_check
      _
    $region31: #{tpu_custom_call.1} parent=1 // pred_check_branch
      %113 = sbr.rel (0) target = $region33
    $region32: #{tpu_custom_call.1} parent=1 // pred_region
      %114 = dma.done [#allocation4], 256
    $region33: #{tpu_custom_call.1} parent=1 // pred_fallthru
      _
    %115 = vsyncpa [#allocation3], 1
    %116 = vsyncpa [#allocation6], 1
    %117 = vsyncpa [#allocation4], 1

</llo_original>
